<compile_context>
chip_gen: v5e
topology: v5e:2x2
jax: 0.10.0
libtpu: 0.0.40
codegen_flags: <defaults>
</compile_context>

<pallas_src>
import functools
import math

import jax
import jax.numpy as jnp
from jax.experimental import pallas as pl
from jax.experimental.pallas import tpu as pltpu


# ----------------------------------------------------------------------------
# helpers shared by kernel and reference (pure jnp, exact math)
# ----------------------------------------------------------------------------
def _layer_norm(x, gamma, beta, eps=1e-5):
    mu = jnp.mean(x, axis=-1, keepdims=True)
    var = jnp.mean((x - mu) ** 2, axis=-1, keepdims=True)
    return (x - mu) / jnp.sqrt(var + eps) * gamma + beta


def _softmax(s):
    m = jnp.max(s, axis=-1, keepdims=True)
    e = jnp.exp(s - m)
    return e / jnp.sum(e, axis=-1, keepdims=True)


def _gelu(x):
    return jax.nn.gelu(x, approximate=True)


# ----------------------------------------------------------------------------
# Pallas kernel: entire block forward in ONE invocation (no grid).
#
# Inputs (all f32, whole-array VMEM blocks):
#   x        (N, D)                      flattened activations, N = B*L
#   bias     (N, N)                      additive attention bias (0 / -1e9)
#   W_x      (D, 3D + down)              [Wq | Wk | Wv | A1_down]
#   W_h      (D, down + inner)           [A2_down | W1]
#   W_c1     (D + down, D)               [[Wfc], [A1_up]]
#   W_c2     (down + inner, D)           [[A2_up], [W2]]
#   vec      (8 + H, slab_w)             rows: bx, bh, bc1, ln1_g, ln1_b,
#                                              bc2, ln2_g, ln2_b, head masks
# ----------------------------------------------------------------------------
def _block_kernel(n_heads,
                  x_ref, bias_ref, wx_ref, wh_ref, wc1_ref, wc2_ref, vec_ref,
                  out_ref):
    x = x_ref[...]                         # (N, D)
    attn_bias = bias_ref[...]              # (N, N)

    N, D = x.shape
    d_k = D // n_heads
    three_d = 3 * D
    d_down = wx_ref.shape[1] - three_d
    d_inner = wh_ref.shape[1] - d_down
    scale = 1.0 / math.sqrt(d_k)

    vec = vec_ref[...]                     # (8 + H, slab_w)
    bx = vec[0:1, : three_d + d_down]      # [bq|bk|bv|a1_down_b]
    bh = vec[1:2, : d_down + d_inner]      # [a2_down_b|b1]
    bc1 = vec[2:3, :D]                     # bfc + a1_up_b
    ln1_g, ln1_b = vec[3:4, :D], vec[4:5, :D]
    bc2 = vec[5:6, :D]                     # a2_up_b + b2
    ln2_g, ln2_b = vec[6:7, :D], vec[7:8, :D]
    hm_all = vec[8:8 + n_heads, :D]        # (H, D) 0/1 head lane masks

    # ---- fused projection on x: QKV + adapter1-down -------------------------
    xp = jnp.dot(x, wx_ref[...], preferred_element_type=jnp.float32) + bx
    q = xp[:, 0:D]
    k = xp[:, D:2 * D]
    v = xp[:, 2 * D:3 * D]
    a1_pre = xp[:, 3 * D:3 * D + d_down]

    # ---- stacked multi-head attention (one QK^T, one softmax, one PV) -------
    # q masked to head-h lanes contracts with full k but only picks up head-h
    # lanes -> correct per-head scores; stacking heads along rows keeps a
    # single MXU pass per stage.
    q_st = jnp.concatenate(
        [q * hm_all[h:h + 1, :] for h in range(n_heads)], axis=0)    # (H*N, D)
    s = jax.lax.dot_general(q_st, k, (((1,), (1,)), ((), ())),
                            preferred_element_type=jnp.float32) * scale
    bias_st = jnp.concatenate([attn_bias] * n_heads, axis=0)          # (H*N, N)
    p = _softmax(s + bias_st)                                         # (H*N, N)
    ctx_st = jnp.dot(p, v, preferred_element_type=jnp.float32)        # (H*N, D)
    # keep only head-h lanes of head-h row block; disjoint lanes sum back into
    # the "concatenated heads" context for free.
    context = ctx_st[0:N, :] * hm_all[0:1, :]
    for h in range(1, n_heads):
        context = context + ctx_st[h * N:(h + 1) * N, :] * hm_all[h:h + 1, :]

    # ---- fused output proj + adapter1-up:  mha + adapter1(x) ----------------
    lhs1 = jnp.concatenate([context, _gelu(a1_pre)], axis=1)          # (N, D+down)
    mha_plus_a1 = jnp.dot(lhs1, wc1_ref[...],
                          preferred_element_type=jnp.float32) + bc1
    hidden = _layer_norm(x + mha_plus_a1, ln1_g, ln1_b)

    # ---- fused projection on hidden: adapter2-down + FFN-1 ------------------
    hp = jnp.dot(hidden, wh_ref[...], preferred_element_type=jnp.float32) + bh
    a2_pre = hp[:, 0:d_down]
    ff_pre = hp[:, d_down:d_down + d_inner]

    # ---- fused adapter2-up + FFN-2:  adapter2(h) + ffn(h) --------------------
    lhs2 = jnp.concatenate([_gelu(a2_pre), _gelu(ff_pre)], axis=1)    # (N, down+inner)
    a2_plus_ff = jnp.dot(lhs2, wc2_ref[...],
                         preferred_element_type=jnp.float32) + bc2

    # NOTE: output last dim is D=32 (<128 lanes) -> masked stores; a lane-dense
    # relayout would cost as much as it saves at these sizes.
    out_ref[...] = _layer_norm(hidden + a2_plus_ff, ln2_g, ln2_b)


# ----------------------------------------------------------------------------
# one-time packing (hoisted out of the per-call hot path)
# ----------------------------------------------------------------------------
def prepare_block(params, mask, n_heads):
    B, L, _ = mask.shape
    D = params["wq"].shape[0]
    d_down = params["a1_down_w"].shape[1]
    d_inner = params["w1"].shape[1]
    assert D % n_heads == 0, "embedding_dim must be divisible by n_heads"
    d_k = D // n_heads
    N = B * L
    f32 = jnp.float32

    # weight slabs
    W_x = jnp.concatenate([params["wq"], params["wk"], params["wv"],
                           params["a1_down_w"]], axis=1)            # (D, 3D+down)
    W_h = jnp.concatenate([params["a2_down_w"], params["w1"]], axis=1)
    W_c1 = jnp.concatenate([params["wfc"], params["a1_up_w"]], axis=0)
    W_c2 = jnp.concatenate([params["a2_up_w"], params["w2"]], axis=0)

    # bias / LayerNorm / head-mask slab (rows padded to a common width)
    slab_w = max(3 * D + d_down, d_down + d_inner, D)

    def row(v):
        v = jnp.asarray(v, f32).reshape(1, -1)
        return jnp.pad(v, ((0, 0), (0, slab_w - v.shape[1])))

    bx = jnp.concatenate([params["bq"], params["bk"], params["bv"],
                          params["a1_down_b"]], axis=1)
    bh = jnp.concatenate([params["a2_down_b"], params["b1"]], axis=1)
    bc1 = params["bfc"] + params["a1_up_b"]
    bc2 = params["a2_up_b"] + params["b2"]
    hm = (jnp.arange(D)[None, :] // d_k
          == jnp.arange(n_heads)[:, None]).astype(f32)              # (H, D)
    vec = jnp.concatenate(
        [row(bx), row(bh), row(bc1), row(params["ln1_g"]), row(params["ln1_b"]),
         row(bc2), row(params["ln2_g"]), row(params["ln2_b"])]
        + [row(hm[h]) for h in range(n_heads)], axis=0)              # (8+H, slab_w)

    # additive attention bias: 0 = attend, -1e9 = masked or cross-batch.
    # built with broadcast/where (block-diagonal embed) -- no gather.
    bias_blocks = jnp.where(mask > 0.0, 0.0, -1e9).astype(f32)       # (B, L, L)
    eye = jnp.eye(B, dtype=bool)
    attn_bias = jnp.where(eye[:, None, :, None],
                          bias_blocks[:, :, None, :],
                          f32(-1e9)).reshape(N, N)                   # (N, N)

    return dict(W_x=W_x, W_h=W_h, W_c1=W_c1, W_c2=W_c2,
                vec=vec, attn_bias=attn_bias)


# ----------------------------------------------------------------------------
# per-call wrapper (only reshapes x; everything else is pre-packed)
# ----------------------------------------------------------------------------
@functools.partial(jax.jit, static_argnames=("n_heads",))
def sasrec_parallel_adapted_block(x, packed, n_heads):
    B, L, D = x.shape
    N = B * L
    x_flat = x.reshape(N, D)

    d_down = packed["W_c1"].shape[0] - D
    d_inner = packed["W_h"].shape[1] - d_down
    H = n_heads

    flops = (2 * N * D * (3 * D + d_down)          # x projection
             + 2 * H * N * N * D                    # QK^T
             + 2 * H * N * N * D                    # PV
             + 2 * N * (D + d_down) * D             # fc + adapter1-up
             + 2 * N * D * (d_down + d_inner)       # hidden projection
             + 2 * N * (d_down + d_inner) * D)      # adapter2-up + W2
    transcendentals = H * N * N + N * (2 * d_down + d_inner)
    in_arrays = (x_flat, packed["attn_bias"], packed["W_x"], packed["W_h"],
                 packed["W_c1"], packed["W_c2"], packed["vec"])
    bytes_accessed = 4 * (sum(int(a.size) for a in in_arrays) + N * D)

    vmem = pl.BlockSpec(memory_space=pltpu.MemorySpace.VMEM)
    out_flat = pl.pallas_call(
        functools.partial(_block_kernel, n_heads),
        out_shape=jax.ShapeDtypeStruct((N, D), jnp.float32),
        in_specs=[vmem] * len(in_arrays),
        out_specs=vmem,
        cost_estimate=pl.CostEstimate(flops=flops,
                                      transcendentals=transcendentals,
                                      bytes_accessed=bytes_accessed),
    )(*in_arrays)

    return out_flat.reshape(B, L, D)


# ----------------------------------------------------------------------------
# pure-JAX reference (mirrors the PyTorch module math, per-batch / per-head)
# ----------------------------------------------------------------------------
def reference(x, mask, p, n_heads):
    B, L, D = x.shape
    d_k = D // n_heads

    q = (x @ p["wq"] + p["bq"]).reshape(B, L, n_heads, d_k).transpose(0, 2, 1, 3)
    k = (x @ p["wk"] + p["bk"]).reshape(B, L, n_heads, d_k).transpose(0, 2, 1, 3)
    v = (x @ p["wv"] + p["bv"]).reshape(B, L, n_heads, d_k).transpose(0, 2, 1, 3)
    s = jnp.einsum("bhqd,bhkd->bhqk", q, k) / math.sqrt(d_k)
    s = jnp.where(mask[:, None] > 0.0, s, -1e9)
    a = jax.nn.softmax(s, axis=-1)
    ctx = jnp.einsum("bhqk,bhkd->bhqd", a, v).transpose(0, 2, 1, 3).reshape(B, L, D)
    mha = ctx @ p["wfc"] + p["bfc"]

    a1 = _gelu(x @ p["a1_down_w"] + p["a1_down_b"])
    a1 = a1 @ p["a1_up_w"] + p["a1_up_b"]
    h = _layer_norm(a1 + x + mha, p["ln1_g"], p["ln1_b"])

    a2 = _gelu(h @ p["a2_down_w"] + p["a2_down_b"])
    a2 = a2 @ p["a2_up_w"] + p["a2_up_b"]
    ff = _gelu(h @ p["w1"] + p["b1"]) @ p["w2"] + p["b2"]
    return _layer_norm(a2 + h + ff, p["ln2_g"], p["ln2_b"])


# ----------------------------------------------------------------------------
# deterministic parameter init (xavier_normal_ for weights, zeros for biases)
# ----------------------------------------------------------------------------
def _xavier_normal(key, shape):
    fan_in, fan_out = shape[0], shape[1]
    std = math.sqrt(2.0 / (fan_in + fan_out))
    return std * jax.random.normal(key, shape, dtype=jnp.float32)


def make_params(key, D, d_inner, adapter_down):
    names_shapes = {
        "wq": (D, D), "wk": (D, D), "wv": (D, D), "wfc": (D, D),
        "a1_down_w": (D, adapter_down), "a1_up_w": (adapter_down, D),
        "a2_down_w": (D, adapter_down), "a2_up_w": (adapter_down, D),
        "w1": (D, d_inner), "w2": (d_inner, D),
    }
    params = {}
    keys = jax.random.split(key, len(names_shapes))
    for (name, shape), k in zip(names_shapes.items(), keys):
        params[name] = _xavier_normal(k, shape)
    params["bq"] = jnp.zeros((1, D), jnp.float32)
    params["bk"] = jnp.zeros((1, D), jnp.float32)
    params["bv"] = jnp.zeros((1, D), jnp.float32)
    params["bfc"] = jnp.zeros((1, D), jnp.float32)
    params["a1_down_b"] = jnp.zeros((1, adapter_down), jnp.float32)
    params["a1_up_b"] = jnp.zeros((1, D), jnp.float32)
    params["a2_down_b"] = jnp.zeros((1, adapter_down), jnp.float32)
    params["a2_up_b"] = jnp.zeros((1, D), jnp.float32)
    params["b1"] = jnp.zeros((1, d_inner), jnp.float32)
    params["b2"] = jnp.zeros((1, D), jnp.float32)
    params["ln1_g"] = jnp.ones((1, D), jnp.float32)
    params["ln1_b"] = jnp.zeros((1, D), jnp.float32)
    params["ln2_g"] = jnp.ones((1, D), jnp.float32)
    params["ln2_b"] = jnp.zeros((1, D), jnp.float32)
    return params


if __name__ == "__main__":
    B, L, D = 2, 8, 32        # batch, seq, embedding_dim
    n_heads = 2               # d_k = d_v = 16
    d_inner = 64              # feed-forward inner dim
    adapter_down = 8          # args.adapter_down_size

    root = jax.random.PRNGKey(0)
    k_x, k_p = jax.random.split(root)

    x = jax.random.normal(k_x, (B, L, D), dtype=jnp.float32)
    # causal attention mask, 1 = attend
    causal = jnp.tril(jnp.ones((L, L), jnp.float32))
    mask = jnp.broadcast_to(causal, (B, L, L))

    params = make_params(k_p, D, d_inner, adapter_down)

    # one-time packing (hoisted out of the per-call path)
    packed = prepare_block(params, mask, n_heads)

    out = sasrec_parallel_adapted_block(x, packed, n_heads)
    out = jax.block_until_ready(out)

    ref = reference(x, mask, params, n_heads)
    assert out.shape == (B, L, D)
    assert jnp.allclose(out, ref, rtol=2e-3, atol=2e-3), "mismatch vs reference"

    print("KERNEL_OK")
</pallas_src>

<mosaic_0001>
module attributes {stable_mosaic.version = 11 : i64} {
  func.func @_block_kernel(%arg0: memref<16x32xf32, #tpu.memory_space<vmem>>, %arg1: memref<16x16xf32, #tpu.memory_space<vmem>>, %arg2: memref<32x104xf32, #tpu.memory_space<vmem>>, %arg3: memref<32x72xf32, #tpu.memory_space<vmem>>, %arg4: memref<40x32xf32, #tpu.memory_space<vmem>>, %arg5: memref<72x32xf32, #tpu.memory_space<vmem>>, %arg6: memref<10x104xf32, #tpu.memory_space<vmem>>, %arg7: memref<16x32xf32, #tpu.memory_space<vmem>>) attributes {dimension_semantics = [], scalar_prefetch = 0 : i64, scratch_operands = 0 : i64, tpu.core_type = #tpu.core_type<tc>} {
    %c0 = arith.constant 0 : index
    %c0_0 = arith.constant 0 : index
    %0 = vector.load %arg0[%c0, %c0_0] : memref<16x32xf32, #tpu.memory_space<vmem>>, vector<16x32xf32>
    %c0_1 = arith.constant 0 : index
    %c0_2 = arith.constant 0 : index
    %1 = vector.load %arg1[%c0_1, %c0_2] : memref<16x16xf32, #tpu.memory_space<vmem>>, vector<16x16xf32>
    %c0_3 = arith.constant 0 : index
    %c0_4 = arith.constant 0 : index
    %2 = vector.load %arg6[%c0_3, %c0_4] : memref<10x104xf32, #tpu.memory_space<vmem>>, vector<10x104xf32>
    %3 = vector.extract_strided_slice %2 {offsets = [0, 0], sizes = [1, 104], strides = [1, 1]} : vector<10x104xf32> to vector<1x104xf32>
    %4 = vector.extract_strided_slice %2 {offsets = [1, 0], sizes = [1, 72], strides = [1, 1]} : vector<10x104xf32> to vector<1x72xf32>
    %5 = vector.extract_strided_slice %2 {offsets = [2, 0], sizes = [1, 32], strides = [1, 1]} : vector<10x104xf32> to vector<1x32xf32>
    %6 = vector.extract_strided_slice %2 {offsets = [3, 0], sizes = [1, 32], strides = [1, 1]} : vector<10x104xf32> to vector<1x32xf32>
    %7 = vector.extract_strided_slice %2 {offsets = [4, 0], sizes = [1, 32], strides = [1, 1]} : vector<10x104xf32> to vector<1x32xf32>
    %8 = vector.extract_strided_slice %2 {offsets = [5, 0], sizes = [1, 32], strides = [1, 1]} : vector<10x104xf32> to vector<1x32xf32>
    %9 = vector.extract_strided_slice %2 {offsets = [6, 0], sizes = [1, 32], strides = [1, 1]} : vector<10x104xf32> to vector<1x32xf32>
    %10 = vector.extract_strided_slice %2 {offsets = [7, 0], sizes = [1, 32], strides = [1, 1]} : vector<10x104xf32> to vector<1x32xf32>
    %11 = vector.extract_strided_slice %2 {offsets = [8, 0], sizes = [2, 32], strides = [1, 1]} : vector<10x104xf32> to vector<2x32xf32>
    %c0_5 = arith.constant 0 : index
    %c0_6 = arith.constant 0 : index
    %12 = vector.load %arg2[%c0_5, %c0_6] : memref<32x104xf32, #tpu.memory_space<vmem>>, vector<32x104xf32>
    %cst = arith.constant dense<0.000000e+00> : vector<16x104xf32>
    %13 = tpu.matmul %0, %12, %cst {dimension_numbers = #tpu.dot_dimension_numbers<[1], [0], [0], [1], [0, 0, 1, 1], [], []>} : vector<16x32xf32>, vector<32x104xf32>, vector<16x104xf32> -> vector<16x104xf32>
    %14 = vector.broadcast %3 : vector<1x104xf32> to vector<16x104xf32>
    %15 = arith.addf %13, %14 : vector<16x104xf32>
    %16 = vector.extract_strided_slice %15 {offsets = [0, 0], sizes = [16, 32], strides = [1, 1]} : vector<16x104xf32> to vector<16x32xf32>
    %17 = vector.extract_strided_slice %15 {offsets = [0, 32], sizes = [16, 32], strides = [1, 1]} : vector<16x104xf32> to vector<16x32xf32>
    %18 = vector.extract_strided_slice %15 {offsets = [0, 64], sizes = [16, 32], strides = [1, 1]} : vector<16x104xf32> to vector<16x32xf32>
    %19 = vector.extract_strided_slice %15 {offsets = [0, 96], sizes = [16, 8], strides = [1, 1]} : vector<16x104xf32> to vector<16x8xf32>
    %20 = vector.extract_strided_slice %11 {offsets = [0, 0], sizes = [1, 32], strides = [1, 1]} : vector<2x32xf32> to vector<1x32xf32>
    %21 = vector.broadcast %20 : vector<1x32xf32> to vector<16x32xf32>
    %22 = arith.mulf %16, %21 : vector<16x32xf32>
    %23 = vector.extract_strided_slice %11 {offsets = [1, 0], sizes = [1, 32], strides = [1, 1]} : vector<2x32xf32> to vector<1x32xf32>
    %24 = vector.broadcast %23 : vector<1x32xf32> to vector<16x32xf32>
    %25 = arith.mulf %16, %24 : vector<16x32xf32>
    %26 = tpu.concatenate %22, %25 in 0 : vector<16x32xf32>, vector<16x32xf32> -> vector<32x32xf32>
    %cst_7 = arith.constant dense<0.000000e+00> : vector<32x16xf32>
    %27 = tpu.matmul %26, %17, %cst_7 {dimension_numbers = #tpu.dot_dimension_numbers<[1], [1], [0], [0], [0, 0, 1, 0], [], []>} : vector<32x32xf32>, vector<16x32xf32>, vector<32x16xf32> -> vector<32x16xf32>
    %cst_8 = arith.constant 2.500000e-01 : f32
    %28 = vector.broadcast %cst_8 : f32 to vector<32x16xf32>
    %29 = arith.mulf %27, %28 : vector<32x16xf32>
    %30 = tpu.concatenate %1, %1 in 0 : vector<16x16xf32>, vector<16x16xf32> -> vector<32x16xf32>
    %31 = arith.addf %29, %30 : vector<32x16xf32>
    %cst_9 = arith.constant dense<0xFF800000> : vector<32xf32>
    %32 = vector.multi_reduction <maximumf>, %31, %cst_9 [1] : vector<32x16xf32> to vector<32xf32>
    %33 = vector.shape_cast %32 : vector<32xf32> to vector<32x1xf32>
    %34 = vector.broadcast %33 : vector<32x1xf32> to vector<32x16xf32>
    %35 = arith.subf %31, %34 : vector<32x16xf32>
    %36 = math.exp %35 : vector<32x16xf32>
    %cst_10 = arith.constant dense<0.000000e+00> : vector<32xf32>
    %37 = vector.multi_reduction <add>, %36, %cst_10 [1] : vector<32x16xf32> to vector<32xf32>
    %38 = vector.shape_cast %37 : vector<32xf32> to vector<32x1xf32>
    %39 = vector.broadcast %38 : vector<32x1xf32> to vector<32x16xf32>
    %40 = arith.divf %36, %39 : vector<32x16xf32>
    %cst_11 = arith.constant dense<0.000000e+00> : vector<32x32xf32>
    %41 = tpu.matmul %40, %18, %cst_11 {dimension_numbers = #tpu.dot_dimension_numbers<[1], [0], [0], [1], [0, 0, 1, 1], [], []>} : vector<32x16xf32>, vector<16x32xf32>, vector<32x32xf32> -> vector<32x32xf32>
    %42 = vector.extract_strided_slice %41 {offsets = [0, 0], sizes = [16, 32], strides = [1, 1]} : vector<32x32xf32> to vector<16x32xf32>
    %43 = vector.extract_strided_slice %11 {offsets = [0, 0], sizes = [1, 32], strides = [1, 1]} : vector<2x32xf32> to vector<1x32xf32>
    %44 = vector.broadcast %43 : vector<1x32xf32> to vector<16x32xf32>
    %45 = arith.mulf %42, %44 : vector<16x32xf32>
    %46 = vector.extract_strided_slice %41 {offsets = [16, 0], sizes = [16, 32], strides = [1, 1]} : vector<32x32xf32> to vector<16x32xf32>
    %47 = vector.extract_strided_slice %11 {offsets = [1, 0], sizes = [1, 32], strides = [1, 1]} : vector<2x32xf32> to vector<1x32xf32>
    %48 = vector.broadcast %47 : vector<1x32xf32> to vector<16x32xf32>
    %49 = arith.mulf %46, %48 : vector<16x32xf32>
    %50 = arith.addf %45, %49 : vector<16x32xf32>
    %51 = arith.mulf %19, %19 : vector<16x8xf32>
    %52 = arith.mulf %19, %51 : vector<16x8xf32>
    %cst_12 = arith.constant 4.471500e-02 : f32
    %53 = vector.broadcast %cst_12 : f32 to vector<16x8xf32>
    %54 = arith.mulf %53, %52 : vector<16x8xf32>
    %55 = arith.addf %19, %54 : vector<16x8xf32>
    %cst_13 = arith.constant 0.797884583 : f32
    %56 = vector.broadcast %cst_13 : f32 to vector<16x8xf32>
    %57 = arith.mulf %56, %55 : vector<16x8xf32>
    %58 = math.tanh %57 : vector<16x8xf32>
    %cst_14 = arith.constant 1.000000e+00 : f32
    %59 = vector.broadcast %cst_14 : f32 to vector<16x8xf32>
    %60 = arith.addf %59, %58 : vector<16x8xf32>
    %cst_15 = arith.constant 5.000000e-01 : f32
    %61 = vector.broadcast %cst_15 : f32 to vector<16x8xf32>
    %62 = arith.mulf %61, %60 : vector<16x8xf32>
    %63 = arith.mulf %19, %62 : vector<16x8xf32>
    %64 = tpu.concatenate %50, %63 in 1 : vector<16x32xf32>, vector<16x8xf32> -> vector<16x40xf32>
    %c0_16 = arith.constant 0 : index
    %c0_17 = arith.constant 0 : index
    %65 = vector.load %arg4[%c0_16, %c0_17] : memref<40x32xf32, #tpu.memory_space<vmem>>, vector<40x32xf32>
    %cst_18 = arith.constant dense<0.000000e+00> : vector<16x32xf32>
    %66 = tpu.matmul %64, %65, %cst_18 {dimension_numbers = #tpu.dot_dimension_numbers<[1], [0], [0], [1], [0, 0, 1, 1], [], []>} : vector<16x40xf32>, vector<40x32xf32>, vector<16x32xf32> -> vector<16x32xf32>
    %67 = vector.broadcast %5 : vector<1x32xf32> to vector<16x32xf32>
    %68 = arith.addf %66, %67 : vector<16x32xf32>
    %69 = arith.addf %0, %68 : vector<16x32xf32>
    %cst_19 = arith.constant dense<0.000000e+00> : vector<16xf32>
    %70 = vector.multi_reduction <add>, %69, %cst_19 [1] : vector<16x32xf32> to vector<16xf32>
    %71 = vector.shape_cast %70 : vector<16xf32> to vector<16x1xf32>
    %cst_20 = arith.constant 3.200000e+01 : f32
    %72 = vector.broadcast %cst_20 : f32 to vector<16x1xf32>
    %73 = arith.divf %71, %72 : vector<16x1xf32>
    %74 = vector.broadcast %73 : vector<16x1xf32> to vector<16x32xf32>
    %75 = arith.subf %69, %74 : vector<16x32xf32>
    %76 = arith.mulf %75, %75 : vector<16x32xf32>
    %cst_21 = arith.constant dense<0.000000e+00> : vector<16xf32>
    %77 = vector.multi_reduction <add>, %76, %cst_21 [1] : vector<16x32xf32> to vector<16xf32>
    %78 = vector.shape_cast %77 : vector<16xf32> to vector<16x1xf32>
    %cst_22 = arith.constant 3.200000e+01 : f32
    %79 = vector.broadcast %cst_22 : f32 to vector<16x1xf32>
    %80 = arith.divf %78, %79 : vector<16x1xf32>
    %81 = vector.broadcast %73 : vector<16x1xf32> to vector<16x32xf32>
    %82 = arith.subf %69, %81 : vector<16x32xf32>
    %cst_23 = arith.constant 9.99999974E-6 : f32
    %83 = vector.broadcast %cst_23 : f32 to vector<16x1xf32>
    %84 = arith.addf %80, %83 : vector<16x1xf32>
    %85 = math.sqrt %84 : vector<16x1xf32>
    %86 = vector.broadcast %85 : vector<16x1xf32> to vector<16x32xf32>
    %87 = arith.divf %82, %86 : vector<16x32xf32>
    %88 = vector.broadcast %6 : vector<1x32xf32> to vector<16x32xf32>
    %89 = arith.mulf %87, %88 : vector<16x32xf32>
    %90 = vector.broadcast %7 : vector<1x32xf32> to vector<16x32xf32>
    %91 = arith.addf %89, %90 : vector<16x32xf32>
    %c0_24 = arith.constant 0 : index
    %c0_25 = arith.constant 0 : index
    %92 = vector.load %arg3[%c0_24, %c0_25] : memref<32x72xf32, #tpu.memory_space<vmem>>, vector<32x72xf32>
    %cst_26 = arith.constant dense<0.000000e+00> : vector<16x72xf32>
    %93 = tpu.matmul %91, %92, %cst_26 {dimension_numbers = #tpu.dot_dimension_numbers<[1], [0], [0], [1], [0, 0, 1, 1], [], []>} : vector<16x32xf32>, vector<32x72xf32>, vector<16x72xf32> -> vector<16x72xf32>
    %94 = vector.broadcast %4 : vector<1x72xf32> to vector<16x72xf32>
    %95 = arith.addf %93, %94 : vector<16x72xf32>
    %96 = vector.extract_strided_slice %95 {offsets = [0, 0], sizes = [16, 8], strides = [1, 1]} : vector<16x72xf32> to vector<16x8xf32>
    %97 = vector.extract_strided_slice %95 {offsets = [0, 8], sizes = [16, 64], strides = [1, 1]} : vector<16x72xf32> to vector<16x64xf32>
    %98 = arith.mulf %96, %96 : vector<16x8xf32>
    %99 = arith.mulf %96, %98 : vector<16x8xf32>
    %cst_27 = arith.constant 4.471500e-02 : f32
    %100 = vector.broadcast %cst_27 : f32 to vector<16x8xf32>
    %101 = arith.mulf %100, %99 : vector<16x8xf32>
    %102 = arith.addf %96, %101 : vector<16x8xf32>
    %cst_28 = arith.constant 0.797884583 : f32
    %103 = vector.broadcast %cst_28 : f32 to vector<16x8xf32>
    %104 = arith.mulf %103, %102 : vector<16x8xf32>
    %105 = math.tanh %104 : vector<16x8xf32>
    %cst_29 = arith.constant 1.000000e+00 : f32
    %106 = vector.broadcast %cst_29 : f32 to vector<16x8xf32>
    %107 = arith.addf %106, %105 : vector<16x8xf32>
    %cst_30 = arith.constant 5.000000e-01 : f32
    %108 = vector.broadcast %cst_30 : f32 to vector<16x8xf32>
    %109 = arith.mulf %108, %107 : vector<16x8xf32>
    %110 = arith.mulf %96, %109 : vector<16x8xf32>
    %111 = arith.mulf %97, %97 : vector<16x64xf32>
    %112 = arith.mulf %97, %111 : vector<16x64xf32>
    %cst_31 = arith.constant 4.471500e-02 : f32
    %113 = vector.broadcast %cst_31 : f32 to vector<16x64xf32>
    %114 = arith.mulf %113, %112 : vector<16x64xf32>
    %115 = arith.addf %97, %114 : vector<16x64xf32>
    %cst_32 = arith.constant 0.797884583 : f32
    %116 = vector.broadcast %cst_32 : f32 to vector<16x64xf32>
    %117 = arith.mulf %116, %115 : vector<16x64xf32>
    %118 = math.tanh %117 : vector<16x64xf32>
    %cst_33 = arith.constant 1.000000e+00 : f32
    %119 = vector.broadcast %cst_33 : f32 to vector<16x64xf32>
    %120 = arith.addf %119, %118 : vector<16x64xf32>
    %cst_34 = arith.constant 5.000000e-01 : f32
    %121 = vector.broadcast %cst_34 : f32 to vector<16x64xf32>
    %122 = arith.mulf %121, %120 : vector<16x64xf32>
    %123 = arith.mulf %97, %122 : vector<16x64xf32>
    %124 = tpu.concatenate %110, %123 in 1 : vector<16x8xf32>, vector<16x64xf32> -> vector<16x72xf32>
    %c0_35 = arith.constant 0 : index
    %c0_36 = arith.constant 0 : index
    %125 = vector.load %arg5[%c0_35, %c0_36] : memref<72x32xf32, #tpu.memory_space<vmem>>, vector<72x32xf32>
    %cst_37 = arith.constant dense<0.000000e+00> : vector<16x32xf32>
    %126 = tpu.matmul %124, %125, %cst_37 {dimension_numbers = #tpu.dot_dimension_numbers<[1], [0], [0], [1], [0, 0, 1, 1], [], []>} : vector<16x72xf32>, vector<72x32xf32>, vector<16x32xf32> -> vector<16x32xf32>
    %127 = vector.broadcast %8 : vector<1x32xf32> to vector<16x32xf32>
    %128 = arith.addf %126, %127 : vector<16x32xf32>
    %129 = arith.addf %91, %128 : vector<16x32xf32>
    %cst_38 = arith.constant dense<0.000000e+00> : vector<16xf32>
    %130 = vector.multi_reduction <add>, %129, %cst_38 [1] : vector<16x32xf32> to vector<16xf32>
    %131 = vector.shape_cast %130 : vector<16xf32> to vector<16x1xf32>
    %cst_39 = arith.constant 3.200000e+01 : f32
    %132 = vector.broadcast %cst_39 : f32 to vector<16x1xf32>
    %133 = arith.divf %131, %132 : vector<16x1xf32>
    %134 = vector.broadcast %133 : vector<16x1xf32> to vector<16x32xf32>
    %135 = arith.subf %129, %134 : vector<16x32xf32>
    %136 = arith.mulf %135, %135 : vector<16x32xf32>
    %cst_40 = arith.constant dense<0.000000e+00> : vector<16xf32>
    %137 = vector.multi_reduction <add>, %136, %cst_40 [1] : vector<16x32xf32> to vector<16xf32>
    %138 = vector.shape_cast %137 : vector<16xf32> to vector<16x1xf32>
    %cst_41 = arith.constant 3.200000e+01 : f32
    %139 = vector.broadcast %cst_41 : f32 to vector<16x1xf32>
    %140 = arith.divf %138, %139 : vector<16x1xf32>
    %141 = vector.broadcast %133 : vector<16x1xf32> to vector<16x32xf32>
    %142 = arith.subf %129, %141 : vector<16x32xf32>
    %cst_42 = arith.constant 9.99999974E-6 : f32
    %143 = vector.broadcast %cst_42 : f32 to vector<16x1xf32>
    %144 = arith.addf %140, %143 : vector<16x1xf32>
    %145 = math.sqrt %144 : vector<16x1xf32>
    %146 = vector.broadcast %145 : vector<16x1xf32> to vector<16x32xf32>
    %147 = arith.divf %142, %146 : vector<16x32xf32>
    %148 = vector.broadcast %9 : vector<1x32xf32> to vector<16x32xf32>
    %149 = arith.mulf %147, %148 : vector<16x32xf32>
    %150 = vector.broadcast %10 : vector<1x32xf32> to vector<16x32xf32>
    %151 = arith.addf %149, %150 : vector<16x32xf32>
    %c0_43 = arith.constant 0 : index
    %c0_44 = arith.constant 0 : index
    %152 = vector.load %arg7[%c0_43, %c0_44] : memref<16x32xf32, #tpu.memory_space<vmem>>, vector<16x32xf32>
    tpu.vector_store %arg7[%c0_43, %c0_44], %151 {strides = array<i32>} : memref<16x32xf32, #tpu.memory_space<vmem>>, vector<16x32xf32>,
    return
  }
}

</mosaic_0001>

<llo_original>
// kernel: sasrec_parallel_adapted_block.1
$region0: #{sasrec_parallel_adapted_block.1}
  #allocation0 [shape = 'u32[]', space=smem, size = 0x4, offset = 0x4, fixed_abs, tag = 'smem constant byte address 0x4 - core index']
  #allocation1 [shape = 'u32[72,128]{1,0:T(1,128)}', space=vmem, size = 0x9000, scoped, tag = 'internal scratch']
  %s0 = inlined_call_operand.vmem [shape: f32[16,32], index: 0, kind: input, shape index: {}]
  %s1 = inlined_call_operand.vmem [shape: f32[16,16], index: 1, kind: input, shape index: {}]
  %s2 = inlined_call_operand.vmem [shape: f32[32,104], index: 2, kind: input, shape index: {}]
  %s3 = inlined_call_operand.vmem [shape: f32[32,72], index: 3, kind: input, shape index: {}]
  %s4 = inlined_call_operand.vmem [shape: f32[40,32], index: 4, kind: input, shape index: {}]
  %s5 = inlined_call_operand.vmem [shape: f32[72,32], index: 5, kind: input, shape index: {}]
  %s6 = inlined_call_operand.vmem [shape: f32[10,104], index: 6, kind: input, shape index: {}]
  %s7 = inlined_call_operand.hbm [shape: f32[16,32], index: 7, kind: output, shape index: {}]
  %s8 = sld [smem:[#allocation0]]
  $region38: #{sasrec_parallel_adapted_block.1} parent=0
    _
  %s10 = ssub.s32 1, %s8
  %s11 = scalar_select 0, %s10, %s8
  $region1: #{sasrec_parallel_adapted_block.1} parent=0
    #allocation2 [shape = 'u8[8192]{0}', space=vmem, size = 0x2000, scoped, tag = 'output window, operand 0, single buffered']
    #allocation3 [shape = 's32[1]{0}', space=sflag, size = 0x4, scoped, tag = 'scoped memory for sasrec_parallel_adapted_block.1']
    %12 = vsyncpa [#allocation3], 0
    // Predicated region
    $region2: #{sasrec_parallel_adapted_block.1} parent=1 // pred_check
      _
    $region3: #{sasrec_parallel_adapted_block.1} parent=1 // pred_check_branch
      %14 = sbr.rel (0) target = $region5
    $region4: #{sasrec_parallel_adapted_block.1} parent=1 // pred_region
      _
    $region5: #{sasrec_parallel_adapted_block.1} parent=1 // pred_fallthru
      _
    // Predicated region
    $region6: #{sasrec_parallel_adapted_block.1} parent=1 // pred_check
      _
    $region7: #{sasrec_parallel_adapted_block.1} parent=1 // pred_check_branch
      %16 = sbr.rel (0) target = $region9
    $region8: #{sasrec_parallel_adapted_block.1} parent=1 // pred_region
      _
    $region9: #{sasrec_parallel_adapted_block.1} parent=1 // pred_fallthru
      _
    // Predicated region
    $region10: #{sasrec_parallel_adapted_block.1} parent=1 // pred_check
      _
    $region11: #{sasrec_parallel_adapted_block.1} parent=1 // pred_check_branch
      %18 = sbr.rel (0) target = $region13
    $region12: #{sasrec_parallel_adapted_block.1} parent=1 // pred_region
      _
    $region13: #{sasrec_parallel_adapted_block.1} parent=1 // pred_fallthru
      _
    // Predicated region
    $region14: #{sasrec_parallel_adapted_block.1} parent=1 // pred_check
      _
    $region15: #{sasrec_parallel_adapted_block.1} parent=1 // pred_check_branch
      %20 = sbr.rel (0) target = $region17
    $region16: #{sasrec_parallel_adapted_block.1} parent=1 // pred_region
      _
    $region17: #{sasrec_parallel_adapted_block.1} parent=1 // pred_fallthru
      _
    // Predicated region
    $region18: #{sasrec_parallel_adapted_block.1} parent=1 // pred_check
      _
    $region19: #{sasrec_parallel_adapted_block.1} parent=1 // pred_check_branch
      %22 = sbr.rel (0) target = $region21
    $region20: #{sasrec_parallel_adapted_block.1} parent=1 // pred_region
      _
    $region21: #{sasrec_parallel_adapted_block.1} parent=1 // pred_fallthru
      _
    // Predicated region
    $region22: #{sasrec_parallel_adapted_block.1} parent=1 // pred_check
      _
    $region23: #{sasrec_parallel_adapted_block.1} parent=1 // pred_check_branch
      %24 = sbr.rel (0) target = $region25
    $region24: #{sasrec_parallel_adapted_block.1} parent=1 // pred_region
      _
    $region25: #{sasrec_parallel_adapted_block.1} parent=1 // pred_fallthru
      _
    // Predicated region
    $region26: #{sasrec_parallel_adapted_block.1} parent=1 // pred_check
      _
    $region27: #{sasrec_parallel_adapted_block.1} parent=1 // pred_check_branch
      %26 = sbr.rel (0) target = $region29
    $region28: #{sasrec_parallel_adapted_block.1} parent=1 // pred_region
      _
    $region29: #{sasrec_parallel_adapted_block.1} parent=1 // pred_fallthru
      _
    %v27 = vld [vmem:[%s0] sm:$0xff]
    %v28 = vld [vmem:[%s0 + $0x8] sm:$0xff]
    %v29 = vld [vmem:[%s1] sm:$0xff]
    %v30 = vld [vmem:[%s1 + $0x8] sm:$0xff]
    %v31 = vld [vmem:[%s6] sm:$0xff]
    %v32 = vld [vmem:[%s6 + $0x8] sm:$0x3]
    %v33 = vld [vmem:[%s2] sm:$0xff]
    %v34 = vld [vmem:[%s2 + $0x8] sm:$0xff]
    %v35 = vld [vmem:[%s2 + $0x10] sm:$0xff]
    %v36 = vld [vmem:[%s2 + $0x18] sm:$0xff]
    %v37 = vperm.slane %v31, 0
    %vm38 = vcmask 261120
    %v40 = vsel %vm38, %v27, 0
    %v43 = vsel %vm38, %v28, 0
    %45 = vmatpush.msra.mxu0 0.0
    %46 = vmatpush.msra.mxu0 0.0
    %47 = vmatpush.msra.mxu0 0.0
    %48 = vmatpush.msra.mxu0 0.0
    %49 = vmatpush.msra.mxu0 0.0
    %50 = vmatpush.msra.mxu0 0.0
    %51 = vmatpush.msra.mxu0 0.0
    %52 = vmatpush.msra.mxu0 0.0
    %53 = vmatpush.msra.mxu0 0.0
    %54 = vmatpush.msra.mxu0 0.0
    %55 = vmatpush.msra.mxu0 0.0
    %56 = vmatpush.msra.mxu0 0.0
    %57 = vmatpush.msra.mxu0 %v36
    %58 = vmatpush.msra.mxu0 %v35
    %59 = vmatpush.msra.mxu0 %v34
    %60 = vmatpush.msra.mxu0 %v33
    %61 = vmatmul.f32.gmra.mxu0 %v40
    %v62 = vpop.f32.mrf.mxu0
    %v63 = vadd.f32 %v37, %v62
    %64 = vmatmul.f32.gmra.mxu0 %v43
    %v65 = vpop.f32.mrf.mxu0
    %v66 = vadd.f32 %v37, %v65
    %67 = vdwg.mxu0
    %v68 = vperm.slane %v32, 0
    %v69 = vmul.f32 %v63, %v68
    %v70 = vmul.f32 %v66, %v68
    %v71 = vperm.slane %v32, 1
    %v72 = vmul.f32 %v63, %v71
    %v73 = vmul.f32 %v66, %v71
    %76 = vrot.lane.b32.xlu0 %v63, 96
    %v77 = vpop.permute.xlu0 %76
    %78 = vrot.lane.b32.xlu0 %v66, 96
    %v79 = vpop.permute.xlu0 %78
    %v81 = vsel %vm38, %v69, 0
    %v84 = vsel %vm38, %v70, 0
    %v87 = vsel %vm38, %v72, 0
    %v90 = vsel %vm38, %v73, 0
    %v92 = vsel %vm38, %v77, 0
    %v94 = vsel %vm38, %v79, 0
    %96 = vmatpush.xpose.msra.mxu0 0.0
    %97 = vmatpush.xpose.msra.mxu0 0.0
    %98 = vmatpush.xpose.msra.mxu0 0.0
    %99 = vmatpush.xpose.msra.mxu0 0.0
    %100 = vmatpush.xpose.msra.mxu0 0.0
    %101 = vmatpush.xpose.msra.mxu0 0.0
    %102 = vmatpush.xpose.msra.mxu0 0.0
    %103 = vmatpush.xpose.msra.mxu0 0.0
    %104 = vmatpush.xpose.msra.mxu0 0.0
    %105 = vmatpush.xpose.msra.mxu0 0.0
    %106 = vmatpush.xpose.msra.mxu0 0.0
    %107 = vmatpush.xpose.msra.mxu0 0.0
    %108 = vmatpush.xpose.msra.mxu0 0.0
    %109 = vmatpush.xpose.msra.mxu0 0.0
    %110 = vmatpush.xpose.msra.mxu0 %v94
    %111 = vmatpush.xpose.msra.mxu0 %v92
    %112 = vmatmul.f32.gmra.mxu0 %v81
    %v113 = vpop.f32.mrf.mxu0
    %v114 = vadd.f32 0.0, %v113
    %115 = vmatmul.f32.gmra.mxu0 %v84
    %v116 = vpop.f32.mrf.mxu0
    %v117 = vadd.f32 0.0, %v116
    %118 = vmatmul.f32.gmra.mxu0 %v87
    %v119 = vpop.f32.mrf.mxu0
    %v120 = vadd.f32 0.0, %v119
    %121 = vmatmul.f32.gmra.mxu0 %v90
    %v122 = vpop.f32.mrf.mxu0
    %v123 = vadd.f32 0.0, %v122
    %124 = vdwg.mxu0
    %v125 = vmul.f32 %v114, 0.25
    %v126 = vmul.f32 %v117, 0.25
    %v127 = vmul.f32 %v120, 0.25
    %v128 = vmul.f32 %v123, 0.25
    %v129 = vadd.f32 %v125, %v29
    %v130 = vadd.f32 %v126, %v30
    %v131 = vadd.f32 %v127, %v29
    %v132 = vadd.f32 %v128, %v30
    %vm133 = vcmask 130048
    %v134 = vsel %vm133, %v129, -inf
    %135 = vmax.xlane.f32.xlu0 %v134
    %v136 = vpop.xlane.xlu0 %135
    %v137 = vsel %vm133, %v130, -inf
    %138 = vmax.xlane.f32.xlu0 %v137
    %v139 = vpop.xlane.xlu0 %138
    %v140 = vsel %vm133, %v131, -inf
    %141 = vmax.xlane.f32.xlu0 %v140
    %v142 = vpop.xlane.xlu0 %141
    %v143 = vsel %vm133, %v132, -inf
    %144 = vmax.xlane.f32.xlu0 %v143
    %v145 = vpop.xlane.xlu0 %144
    %v146 = vsub.f32 %v129, %v136
    %v147 = vsub.f32 %v130, %v139
    %v148 = vsub.f32 %v131, %v142
    %v149 = vsub.f32 %v132, %v145
    %v150 = vmul.f32 %v146, 1.442695
    %v151 = vpow.pop %v150
    %v152 = vmul.f32 %v147, 1.442695
    %v153 = vpow.pop %v152
    %v154 = vmul.f32 %v148, 1.442695
    %v155 = vpow.pop %v154
    %v156 = vmul.f32 %v149, 1.442695
    %v157 = vpow.pop %v156
    %v158 = vsel %vm133, %v151, 0.0
    %159 = vadd.xlane.f32.xlu0 %v158
    %v160 = vpop.xlane.xlu0 %159
    %v161 = vsel %vm133, %v153, 0.0
    %162 = vadd.xlane.f32.xlu0 %v161
    %v163 = vpop.xlane.xlu0 %162
    %v164 = vsel %vm133, %v155, 0.0
    %165 = vadd.xlane.f32.xlu0 %v164
    %v166 = vpop.xlane.xlu0 %165
    %v167 = vsel %vm133, %v157, 0.0
    %168 = vadd.xlane.f32.xlu0 %v167
    %v169 = vpop.xlane.xlu0 %168
    %v170 = vrcp.pop %v160
    %v171 = vmul.f32 %v160, %v170
    %v172 = vsub.f32 1.0, %v171
    %v173 = vmul.f32 %v170, %v172
    %v174 = vadd.f32 %v170, %v173
    %vm175 = vweird.f32 %v160
    %vm176 = vweird.f32 %v170
    %vm177 = vmor %vm175, %vm176
    %v178 = vsel %vm177, %v170, %v174
    %v179 = vand.u32 2147483647, %v160
    %vm180 = vcmp.eq.f32.partialorder %v179, 8.507059e+37
    %v181 = vand.u32 %v160, 2147483648
    %v182 = vor.u32 1.1754944e-38, %v181
    %v183 = vsel %vm180, %v182, %v178
    %v184 = vmul.f32 %v151, %v183
    %v185 = vrcp.pop %v163
    %v186 = vmul.f32 %v163, %v185
    %v187 = vsub.f32 1.0, %v186
    %v188 = vmul.f32 %v185, %v187
    %v189 = vadd.f32 %v185, %v188
    %vm190 = vweird.f32 %v163
    %vm191 = vweird.f32 %v185
    %vm192 = vmor %vm190, %vm191
    %v193 = vsel %vm192, %v185, %v189
    %v194 = vand.u32 2147483647, %v163
    %vm195 = vcmp.eq.f32.partialorder %v194, 8.507059e+37
    %v196 = vand.u32 %v163, 2147483648
    %v197 = vor.u32 1.1754944e-38, %v196
    %v198 = vsel %vm195, %v197, %v193
    %v199 = vmul.f32 %v153, %v198
    %v200 = vrcp.pop %v166
    %v201 = vmul.f32 %v166, %v200
    %v202 = vsub.f32 1.0, %v201
    %v203 = vmul.f32 %v200, %v202
    %v204 = vadd.f32 %v200, %v203
    %vm205 = vweird.f32 %v166
    %vm206 = vweird.f32 %v200
    %vm207 = vmor %vm205, %vm206
    %v208 = vsel %vm207, %v200, %v204
    %v209 = vand.u32 2147483647, %v166
    %vm210 = vcmp.eq.f32.partialorder %v209, 8.507059e+37
    %v211 = vand.u32 %v166, 2147483648
    %v212 = vor.u32 1.1754944e-38, %v211
    %v213 = vsel %vm210, %v212, %v208
    %v214 = vmul.f32 %v155, %v213
    %v215 = vrcp.pop %v169
    %v216 = vmul.f32 %v169, %v215
    %v217 = vsub.f32 1.0, %v216
    %v218 = vmul.f32 %v215, %v217
    %v219 = vadd.f32 %v215, %v218
    %vm220 = vweird.f32 %v169
    %vm221 = vweird.f32 %v215
    %vm222 = vmor %vm220, %vm221
    %v223 = vsel %vm222, %v215, %v219
    %v224 = vand.u32 2147483647, %v169
    %vm225 = vcmp.eq.f32.partialorder %v224, 8.507059e+37
    %v226 = vand.u32 %v169, 2147483648
    %v227 = vor.u32 1.1754944e-38, %v226
    %v228 = vsel %vm225, %v227, %v223
    %v229 = vmul.f32 %v157, %v228
    %230 = vrot.lane.b32.xlu0 %v63, 64
    %v231 = vpop.permute.xlu0 %230
    %232 = vrot.lane.b32.xlu0 %v66, 64
    %v233 = vpop.permute.xlu0 %232
    %v237 = vsel %vm133, %v184, 0
    %v240 = vsel %vm133, %v199, 0
    %v243 = vsel %vm133, %v214, 0
    %v246 = vsel %vm133, %v229, 0
    %248 = vmatpush.msra.mxu0 0.0
    %249 = vmatpush.msra.mxu0 0.0
    %250 = vmatpush.msra.mxu0 0.0
    %251 = vmatpush.msra.mxu0 0.0
    %252 = vmatpush.msra.mxu0 0.0
    %253 = vmatpush.msra.mxu0 0.0
    %254 = vmatpush.msra.mxu0 0.0
    %255 = vmatpush.msra.mxu0 0.0
    %256 = vmatpush.msra.mxu0 0.0
    %257 = vmatpush.msra.mxu0 0.0
    %258 = vmatpush.msra.mxu0 0.0
    %259 = vmatpush.msra.mxu0 0.0
    %260 = vmatpush.msra.mxu0 0.0
    %261 = vmatpush.msra.mxu0 0.0
    %262 = vmatpush.msra.mxu0 %v233
    %263 = vmatpush.msra.mxu0 %v231
    %264 = vmatmul.f32.gmra.mxu0 %v237
    %v265 = vpop.f32.mrf.mxu0
    %v266 = vadd.f32 0.0, %v265
    %267 = vmatmul.f32.gmra.mxu0 %v240
    %v268 = vpop.f32.mrf.mxu0
    %v269 = vadd.f32 0.0, %v268
    %270 = vmatmul.f32.gmra.mxu0 %v243
    %v271 = vpop.f32.mrf.mxu0
    %v272 = vadd.f32 0.0, %v271
    %273 = vmatmul.f32.gmra.mxu0 %v246
    %v274 = vpop.f32.mrf.mxu0
    %v275 = vadd.f32 0.0, %v274
    %276 = vdwg.mxu0
    %v277 = vmul.f32 %v266, %v68
    %v278 = vmul.f32 %v269, %v68
    %v279 = vmul.f32 %v272, %v71
    %v280 = vmul.f32 %v275, %v71
    %v281 = vadd.f32 %v277, %v279
    %v282 = vadd.f32 %v278, %v280
    %v283 = vmul.f32 %v63, %v63
    %v284 = vmul.f32 %v66, %v66
    %v285 = vmul.f32 %v63, %v283
    %v286 = vmul.f32 %v66, %v284
    %v287 = vmul.f32 %v285, 0.044715
    %v288 = vmul.f32 %v286, 0.044715
    %v289 = vadd.f32 %v63, %v287
    %v290 = vadd.f32 %v66, %v288
    %v291 = vmul.f32 %v289, 0.7978846
    %v292 = vmul.f32 %v290, 0.7978846
    %v293 = vtanh.pop %v291
    %v294 = vtanh.pop %v292
    %v295 = vadd.f32 %v293, 1.0
    %v296 = vadd.f32 %v294, 1.0
    %v297 = vmul.f32 %v295, 0.5
    %v298 = vmul.f32 %v296, 0.5
    %v299 = vmul.f32 %v63, %v297
    %v300 = vmul.f32 %v66, %v298
    %303 = vrot.lane.b32.xlu0 %v299, 64
    %v304 = vpop.permute.xlu0 %303
    %305 = vrot.lane.b32.xlu0 %v300, 64
    %v306 = vpop.permute.xlu0 %305
    %v309 = vsel %vm38, %v281, %v304
    %v310 = vsel %vm38, %v282, %v306
    %v311 = vld [vmem:[%s4] sm:$0xff]
    %v312 = vld [vmem:[%s4 + $0x8] sm:$0xff]
    %v313 = vld [vmem:[%s4 + $0x10] sm:$0xff]
    %v314 = vld [vmem:[%s4 + $0x18] sm:$0xff]
    %v315 = vld [vmem:[%s4 + $0x20] sm:$0xff]
    %v316 = vperm.slane %v31, 2
    %vm317 = vcmask 326656
    %v319 = vsel %vm317, %v309, 0
    %v322 = vsel %vm317, %v310, 0
    %324 = vmatpush.msra.mxu0 0.0
    %325 = vmatpush.msra.mxu0 0.0
    %326 = vmatpush.msra.mxu0 0.0
    %327 = vmatpush.msra.mxu0 0.0
    %328 = vmatpush.msra.mxu0 0.0
    %329 = vmatpush.msra.mxu0 0.0
    %330 = vmatpush.msra.mxu0 0.0
    %331 = vmatpush.msra.mxu0 0.0
    %332 = vmatpush.msra.mxu0 0.0
    %333 = vmatpush.msra.mxu0 0.0
    %334 = vmatpush.msra.mxu0 0.0
    %335 = vmatpush.msra.mxu0 %v315
    %336 = vmatpush.msra.mxu0 %v314
    %337 = vmatpush.msra.mxu0 %v313
    %338 = vmatpush.msra.mxu0 %v312
    %339 = vmatpush.msra.mxu0 %v311
    %340 = vmatmul.f32.gmra.mxu0 %v319
    %v341 = vpop.f32.mrf.mxu0
    %v342 = vadd.f32 %v316, %v341
    %343 = vmatmul.f32.gmra.mxu0 %v322
    %v344 = vpop.f32.mrf.mxu0
    %v345 = vadd.f32 %v316, %v344
    %346 = vdwg.mxu0
    %v347 = vadd.f32 %v27, %v342
    %v348 = vadd.f32 %v28, %v345
    %v349 = vsel %vm38, %v347, 0.0
    %350 = vadd.xlane.f32.xlu0 %v349
    %v351 = vpop.xlane.xlu0 %350
    %v352 = vsel %vm38, %v348, 0.0
    %353 = vadd.xlane.f32.xlu0 %v352
    %v354 = vpop.xlane.xlu0 %353
    %v355 = vrcp.pop 32.0
    %v356 = vmul.f32 32.0, %v355
    %v357 = vsub.f32 1.0, %v356
    %v358 = vmul.f32 %v355, %v357
    %v359 = vadd.f32 %v355, %v358
    %vm360 = vweird.f32 %v355
    %v361 = vsel %vm360, %v355, %v359
    %v362 = vmul.f32 %v351, %v361
    %v363 = vmul.f32 %v354, %v361
    %v364 = vsub.f32 %v347, %v362
    %v365 = vsub.f32 %v348, %v363
    %v366 = vmul.f32 %v364, %v364
    %v367 = vmul.f32 %v365, %v365
    %v368 = vsel %vm38, %v366, 0.0
    %369 = vadd.xlane.f32.xlu0 %v368
    %v370 = vpop.xlane.xlu0 %369
    %v371 = vsel %vm38, %v367, 0.0
    %372 = vadd.xlane.f32.xlu0 %v371
    %v373 = vpop.xlane.xlu0 %372
    %v374 = vmul.f32 %v370, %v361
    %v375 = vmul.f32 %v373, %v361
    %v376 = vadd.f32 %v374, 1e-05
    %v377 = vadd.f32 %v375, 1e-05
    %v378 = vrsqrt.pop %v376
    %v379 = vmul.f32 %v378, %v376
    %v380 = vmul.f32 %v379, %v378
    %v381 = vmul.f32 0.5, %v380
    %v382 = vsub.f32 1.5, %v381
    %v383 = vmul.f32 %v378, %v382
    %v384 = vmul.f32 %v376, %v383
    %vm385 = vcmp.eq.f32.partialorder %v376, inf
    %v386 = vsel %vm385, %v376, %v384
    %vm387 = vcmp.eq.f32.partialorder %v376, 0.0
    %v388 = vand.u32 %v376, 2147483648
    %v389 = vsel %vm387, %v388, %v386
    %v390 = vrsqrt.pop %v377
    %v391 = vmul.f32 %v390, %v377
    %v392 = vmul.f32 %v391, %v390
    %v393 = vmul.f32 0.5, %v392
    %v394 = vsub.f32 1.5, %v393
    %v395 = vmul.f32 %v390, %v394
    %v396 = vmul.f32 %v377, %v395
    %vm397 = vcmp.eq.f32.partialorder %v377, inf
    %v398 = vsel %vm397, %v377, %v396
    %vm399 = vcmp.eq.f32.partialorder %v377, 0.0
    %v400 = vand.u32 %v377, 2147483648
    %v401 = vsel %vm399, %v400, %v398
    %v402 = vrcp.pop %v389
    %v403 = vmul.f32 %v389, %v402
    %v404 = vsub.f32 1.0, %v403
    %v405 = vmul.f32 %v402, %v404
    %v406 = vadd.f32 %v402, %v405
    %vm407 = vweird.f32 %v389
    %vm408 = vweird.f32 %v402
    %vm409 = vmor %vm407, %vm408
    %v410 = vsel %vm409, %v402, %v406
    %v411 = vand.u32 2147483647, %v389
    %vm412 = vcmp.eq.f32.partialorder %v411, 8.507059e+37
    %v413 = vand.u32 %v389, 2147483648
    %v414 = vor.u32 1.1754944e-38, %v413
    %v415 = vsel %vm412, %v414, %v410
    %v416 = vmul.f32 %v364, %v415
    %v417 = vrcp.pop %v401
    %v418 = vmul.f32 %v401, %v417
    %v419 = vsub.f32 1.0, %v418
    %v420 = vmul.f32 %v417, %v419
    %v421 = vadd.f32 %v417, %v420
    %vm422 = vweird.f32 %v401
    %vm423 = vweird.f32 %v417
    %vm424 = vmor %vm422, %vm423
    %v425 = vsel %vm424, %v417, %v421
    %v426 = vand.u32 2147483647, %v401
    %vm427 = vcmp.eq.f32.partialorder %v426, 8.507059e+37
    %v428 = vand.u32 %v401, 2147483648
    %v429 = vor.u32 1.1754944e-38, %v428
    %v430 = vsel %vm427, %v429, %v425
    %v431 = vmul.f32 %v365, %v430
    %v432 = vperm.slane %v31, 3
    %v433 = vmul.f32 %v416, %v432
    %v434 = vmul.f32 %v431, %v432
    %v435 = vperm.slane %v31, 4
    %v436 = vadd.f32 %v433, %v435
    %v437 = vadd.f32 %v434, %v435
    %v438 = vld [vmem:[%s3] sm:$0xff]
    %v439 = vld [vmem:[%s3 + $0x8] sm:$0xff]
    %v440 = vld [vmem:[%s3 + $0x10] sm:$0xff]
    %v441 = vld [vmem:[%s3 + $0x18] sm:$0xff]
    %v442 = vperm.slane %v31, 1
    %v444 = vsel %vm38, %v436, 0
    %v447 = vsel %vm38, %v437, 0
    %449 = vmatpush.msra.mxu0 0.0
    %450 = vmatpush.msra.mxu0 0.0
    %451 = vmatpush.msra.mxu0 0.0
    %452 = vmatpush.msra.mxu0 0.0
    %453 = vmatpush.msra.mxu0 0.0
    %454 = vmatpush.msra.mxu0 0.0
    %455 = vmatpush.msra.mxu0 0.0
    %456 = vmatpush.msra.mxu0 0.0
    %457 = vmatpush.msra.mxu0 0.0
    %458 = vmatpush.msra.mxu0 0.0
    %459 = vmatpush.msra.mxu0 0.0
    %460 = vmatpush.msra.mxu0 0.0
    %461 = vmatpush.msra.mxu0 %v441
    %462 = vmatpush.msra.mxu0 %v440
    %463 = vmatpush.msra.mxu0 %v439
    %464 = vmatpush.msra.mxu0 %v438
    %465 = vmatmul.f32.gmra.mxu0 %v444
    %v466 = vpop.f32.mrf.mxu0
    %v467 = vadd.f32 %v442, %v466
    %468 = vmatmul.f32.gmra.mxu0 %v447
    %v469 = vpop.f32.mrf.mxu0
    %v470 = vadd.f32 %v442, %v469
    %471 = vdwg.mxu0
    %v472 = vmul.f32 %v467, %v467
    %v473 = vmul.f32 %v470, %v470
    %v474 = vmul.f32 %v467, %v472
    %v475 = vmul.f32 %v470, %v473
    %v476 = vmul.f32 %v474, 0.044715
    %v477 = vmul.f32 %v475, 0.044715
    %v478 = vadd.f32 %v467, %v476
    %v479 = vadd.f32 %v470, %v477
    %v480 = vmul.f32 %v478, 0.7978846
    %v481 = vmul.f32 %v479, 0.7978846
    %v482 = vtanh.pop %v480
    %v483 = vtanh.pop %v481
    %v484 = vadd.f32 %v482, 1.0
    %v485 = vadd.f32 %v483, 1.0
    %v486 = vmul.f32 %v484, 0.5
    %v487 = vmul.f32 %v485, 0.5
    %v488 = vmul.f32 %v467, %v486
    %v489 = vmul.f32 %v470, %v487
    %v490 = vld [vmem:[%s5] sm:$0xff]
    %v491 = vld [vmem:[%s5 + $0x8] sm:$0xff]
    %v492 = vld [vmem:[%s5 + $0x10] sm:$0xff]
    %v493 = vld [vmem:[%s5 + $0x18] sm:$0xff]
    %v494 = vld [vmem:[%s5 + $0x20] sm:$0xff]
    %v495 = vld [vmem:[%s5 + $0x28] sm:$0xff]
    %v496 = vld [vmem:[%s5 + $0x30] sm:$0xff]
    %v497 = vld [vmem:[%s5 + $0x38] sm:$0xff]
    %v498 = vld [vmem:[%s5 + $0x40] sm:$0xff]
    %v499 = vperm.slane %v31, 5
    %vm500 = vcmask 588800
    %v502 = vsel %vm500, %v488, 0
    %v505 = vsel %vm500, %v489, 0
    %507 = vmatpush.msra.mxu0 0.0
    %508 = vmatpush.msra.mxu0 0.0
    %509 = vmatpush.msra.mxu0 0.0
    %510 = vmatpush.msra.mxu0 0.0
    %511 = vmatpush.msra.mxu0 0.0
    %512 = vmatpush.msra.mxu0 0.0
    %513 = vmatpush.msra.mxu0 0.0
    %514 = vmatpush.msra.mxu0 %v498
    %515 = vmatpush.msra.mxu0 %v497
    %516 = vmatpush.msra.mxu0 %v496
    %517 = vmatpush.msra.mxu0 %v495
    %518 = vmatpush.msra.mxu0 %v494
    %519 = vmatpush.msra.mxu0 %v493
    %520 = vmatpush.msra.mxu0 %v492
    %521 = vmatpush.msra.mxu0 %v491
    %522 = vmatpush.msra.mxu0 %v490
    %523 = vmatmul.f32.gmra.mxu0 %v502
    %v524 = vpop.f32.mrf.mxu0
    %v525 = vadd.f32 %v499, %v524
    %526 = vmatmul.f32.gmra.mxu0 %v505
    %v527 = vpop.f32.mrf.mxu0
    %v528 = vadd.f32 %v499, %v527
    %529 = vdwg.mxu0
    %v530 = vadd.f32 %v436, %v525
    %v531 = vadd.f32 %v437, %v528
    %v532 = vsel %vm38, %v530, 0.0
    %533 = vadd.xlane.f32.xlu0 %v532
    %v534 = vpop.xlane.xlu0 %533
    %v535 = vsel %vm38, %v531, 0.0
    %536 = vadd.xlane.f32.xlu0 %v535
    %v537 = vpop.xlane.xlu0 %536
    %v538 = vmul.f32 %v534, %v361
    %v539 = vmul.f32 %v537, %v361
    %v540 = vsub.f32 %v530, %v538
    %v541 = vsub.f32 %v531, %v539
    %v542 = vmul.f32 %v540, %v540
    %v543 = vmul.f32 %v541, %v541
    %v544 = vsel %vm38, %v542, 0.0
    %545 = vadd.xlane.f32.xlu0 %v544
    %v546 = vpop.xlane.xlu0 %545
    %v547 = vsel %vm38, %v543, 0.0
    %548 = vadd.xlane.f32.xlu0 %v547
    %v549 = vpop.xlane.xlu0 %548
    %v550 = vmul.f32 %v546, %v361
    %v551 = vmul.f32 %v549, %v361
    %v552 = vadd.f32 %v550, 1e-05
    %v553 = vadd.f32 %v551, 1e-05
    %v554 = vrsqrt.pop %v552
    %v555 = vmul.f32 %v554, %v552
    %v556 = vmul.f32 %v555, %v554
    %v557 = vmul.f32 0.5, %v556
    %v558 = vsub.f32 1.5, %v557
    %v559 = vmul.f32 %v554, %v558
    %v560 = vmul.f32 %v552, %v559
    %vm561 = vcmp.eq.f32.partialorder %v552, inf
    %v562 = vsel %vm561, %v552, %v560
    %vm563 = vcmp.eq.f32.partialorder %v552, 0.0
    %v564 = vand.u32 %v552, 2147483648
    %v565 = vsel %vm563, %v564, %v562
    %v566 = vrsqrt.pop %v553
    %v567 = vmul.f32 %v566, %v553
    %v568 = vmul.f32 %v567, %v566
    %v569 = vmul.f32 0.5, %v568
    %v570 = vsub.f32 1.5, %v569
    %v571 = vmul.f32 %v566, %v570
    %v572 = vmul.f32 %v553, %v571
    %vm573 = vcmp.eq.f32.partialorder %v553, inf
    %v574 = vsel %vm573, %v553, %v572
    %vm575 = vcmp.eq.f32.partialorder %v553, 0.0
    %v576 = vand.u32 %v553, 2147483648
    %v577 = vsel %vm575, %v576, %v574
    %v578 = vrcp.pop %v565
    %v579 = vmul.f32 %v565, %v578
    %v580 = vsub.f32 1.0, %v579
    %v581 = vmul.f32 %v578, %v580
    %v582 = vadd.f32 %v578, %v581
    %vm583 = vweird.f32 %v565
    %vm584 = vweird.f32 %v578
    %vm585 = vmor %vm583, %vm584
    %v586 = vsel %vm585, %v578, %v582
    %v587 = vand.u32 2147483647, %v565
    %vm588 = vcmp.eq.f32.partialorder %v587, 8.507059e+37
    %v589 = vand.u32 %v565, 2147483648
    %v590 = vor.u32 1.1754944e-38, %v589
    %v591 = vsel %vm588, %v590, %v586
    %v592 = vmul.f32 %v540, %v591
    %v593 = vrcp.pop %v577
    %v594 = vmul.f32 %v577, %v593
    %v595 = vsub.f32 1.0, %v594
    %v596 = vmul.f32 %v593, %v595
    %v597 = vadd.f32 %v593, %v596
    %vm598 = vweird.f32 %v577
    %vm599 = vweird.f32 %v593
    %vm600 = vmor %vm598, %vm599
    %v601 = vsel %vm600, %v593, %v597
    %v602 = vand.u32 2147483647, %v577
    %vm603 = vcmp.eq.f32.partialorder %v602, 8.507059e+37
    %v604 = vand.u32 %v577, 2147483648
    %v605 = vor.u32 1.1754944e-38, %v604
    %v606 = vsel %vm603, %v605, %v601
    %v607 = vmul.f32 %v541, %v606
    %v608 = vperm.slane %v31, 6
    %v609 = vmul.f32 %v592, %v608
    %v610 = vmul.f32 %v607, %v608
    %v611 = vperm.slane %v31, 7
    %v612 = vadd.f32 %v609, %v611
    %v613 = vadd.f32 %v610, %v611
    %614 = vst.msk [vmem:[#allocation2] sm:$0xff] %vm38, %v612
    %615 = vst.msk [vmem:[#allocation2 + $0x8] sm:$0xff] %vm38, %v613
    // Predicated region
    $region30: #{sasrec_parallel_adapted_block.1} parent=1 // pred_check
      _
    $region31: #{sasrec_parallel_adapted_block.1} parent=1 // pred_check_branch
      %617 = sbr.rel (0) target = $region33
    $region32: #{sasrec_parallel_adapted_block.1} parent=1 // pred_region
      %619 = vsyncadd [#allocation3], 0
      %s620 = sshll.u32 [#allocation2], 4
      %s621 = int_to_ptr.vmem [resolvable:$true] %s620
      %s622 = sshll.u32 %s7, 4
      %s623 = int_to_ptr.hbm [resolvable:$true] %s622
      %628 = dma.vmem_to_hbm [thread:$0]  %s621, 256, %s623, [#allocation3], 128, 128, 8
    $region33: #{sasrec_parallel_adapted_block.1} parent=1 // pred_fallthru
      _
    // Predicated region
    $region34: #{sasrec_parallel_adapted_block.1} parent=1 // pred_check
      _
    $region35: #{sasrec_parallel_adapted_block.1} parent=1 // pred_check_branch
      %630 = sbr.rel (0) target = $region37
    $region36: #{sasrec_parallel_adapted_block.1} parent=1 // pred_region
      %632 = dma.done [#allocation3], 256
    $region37: #{sasrec_parallel_adapted_block.1} parent=1 // pred_fallthru
      _
    %633 = vsyncpa [#allocation3], 1

</llo_original>
